<compile_context>
chip_gen: v6e
topology: v6e:2x2x1
jax: 0.10.0
libtpu: 0.0.40
codegen_flags: <defaults>
</compile_context>

<pallas_src>
import jax
import jax.numpy as jnp
from jax.experimental import pallas as pl
from jax.experimental.pallas import tpu as pltpu


def mlp_kernel(x_ref, w1_ref, b1_ref, w2_ref, b2_ref, w3_ref, b3_ref, o_ref):
    x = x_ref[...]  # (tb, in_dim) f32
    # Layer 1: Linear + ReLU (Dropout = identity in eval mode).
    h1 = jnp.dot(x, w1_ref[...], preferred_element_type=jnp.float32) + b1_ref[...]
    h1 = jnp.maximum(h1, 0.0)
    # Layer 2: Linear + ReLU.
    h2 = jnp.dot(h1, w2_ref[...], preferred_element_type=jnp.float32) + b2_ref[...]
    h2 = jnp.maximum(h2, 0.0)
    # Layer 3: logits, stored narrow (tb, out_dim) — no lane padding.
    o_ref[...] = (jnp.dot(h2, w3_ref[...], preferred_element_type=jnp.float32)
                  + b3_ref[...]).astype(o_ref.dtype)


def _round_up(n, m):
    return ((n + m - 1) // m) * m


def simple_ann_forward(x, w1, b1, w2, b2, w3, b3, *, block_b=4096):
    """x: (B, in_dim) f32. Weights (in, out) f32, biases (1, out) f32. Returns (B, out_dim) f32."""
    B, in_dim = x.shape
    out_dim = w3.shape[1]

    # Batch tile: multiple of 8 (f32 sublane packing), regardless of what the caller passes.
    tb = min(_round_up(block_b, 8), _round_up(B, 8))
    if tb >= B:
        # Single block spanning the whole batch; a full-extent block dim is always legal.
        tb = B
    grid = (pl.cdiv(B, tb),)  # ragged tail handled by Pallas (padded reads, masked writes)

    # Constant index_map => block never changes => DMA'd once, stays VMEM-resident.
    resident = lambda arr: pl.BlockSpec(arr.shape, lambda i: (0, 0))

    out = pl.pallas_call(
        mlp_kernel,
        out_shape=jax.ShapeDtypeStruct((B, out_dim), x.dtype),
        grid_spec=pl.GridSpec(
            grid=grid,
            in_specs=[
                pl.BlockSpec((tb, in_dim), lambda i: (i, 0)),   # streamed x tile
                resident(w1), resident(b1),
                resident(w2), resident(b2),
                resident(w3), resident(b3),
            ],
            out_specs=pl.BlockSpec((tb, out_dim), lambda i: (i, 0)),
        ),
        compiler_params=pltpu.CompilerParams(
            dimension_semantics=("parallel",)),
    )(x, w1, b1, w2, b2, w3, b3)

    return out


def init_linear(key, in_dim, out_dim):
    # PyTorch nn.Linear default init: U(-1/sqrt(in_dim), 1/sqrt(in_dim)).
    kw, kb = jax.random.split(key)
    bound = 1.0 / jnp.sqrt(jnp.float32(in_dim))
    # Stored as (in, out) = transpose of PyTorch's (out, in), so forward is x @ W + b.
    w = jax.random.uniform(kw, (in_dim, out_dim), jnp.float32, -bound, bound)
    b = jax.random.uniform(kb, (1, out_dim), jnp.float32, -bound, bound)
    return w, b


def _ref_forward(x, w1, b1, w2, b2, w3, b3):
    # Pure-f32 reference (matches the f32 PyTorch SimpleANN forward in eval mode).
    h = jnp.maximum(jnp.dot(x, w1, preferred_element_type=jnp.float32) + b1, 0.0)
    h = jnp.maximum(jnp.dot(h, w2, preferred_element_type=jnp.float32) + b2, 0.0)
    return jnp.dot(h, w3, preferred_element_type=jnp.float32) + b3


if __name__ == "__main__":
    input_dim, hidden_1, hidden_2, output_dim = 36, 64, 64, 30

    key = jax.random.PRNGKey(0)
    kx, k1, k2, k3 = jax.random.split(key, 4)

    w1, b1 = init_linear(k1, input_dim, hidden_1)
    w2, b2 = init_linear(k2, hidden_1, hidden_2)
    w3, b3 = init_linear(k3, hidden_2, output_dim)

    # Case 1: small batch, single full-extent block (grid = 1).
    batch = 8
    x = jax.random.normal(kx, (batch, input_dim), jnp.float32)
    out = jax.block_until_ready(simple_ann_forward(x, w1, b1, w2, b2, w3, b3))
    ref = _ref_forward(x, w1, b1, w2, b2, w3, b3)
    assert out.shape == (batch, output_dim)
    assert jnp.allclose(out, ref, atol=2e-2, rtol=2e-2), (
        f"case1 max abs err {jnp.max(jnp.abs(out - ref))}")

    # Case 2: ragged batch with a small tile to exercise the cdiv grid + masked tail path.
    batch2 = 19
    x2 = jax.random.normal(kx, (batch2, input_dim), jnp.float32)
    out2 = jax.block_until_ready(
        simple_ann_forward(x2, w1, b1, w2, b2, w3, b3, block_b=8))
    ref2 = _ref_forward(x2, w1, b1, w2, b2, w3, b3)
    assert out2.shape == (batch2, output_dim)
    assert jnp.allclose(out2, ref2, atol=2e-2, rtol=2e-2), (
        f"case2 max abs err {jnp.max(jnp.abs(out2 - ref2))}")

    print("KERNEL_OK")
</pallas_src>

<mosaic_0001>
module attributes {stable_mosaic.version = 11 : i64} {
  func.func @mlp_kernel(%arg0: i32, %arg1: memref<8x36xf32, #tpu.memory_space<vmem>>, %arg2: memref<36x64xf32, #tpu.memory_space<vmem>>, %arg3: memref<1x64xf32, #tpu.memory_space<vmem>>, %arg4: memref<64x64xf32, #tpu.memory_space<vmem>>, %arg5: memref<1x64xf32, #tpu.memory_space<vmem>>, %arg6: memref<64x30xf32, #tpu.memory_space<vmem>>, %arg7: memref<1x30xf32, #tpu.memory_space<vmem>>, %arg8: memref<8x30xf32, #tpu.memory_space<vmem>>) attributes {dimension_semantics = [#tpu.dimension_semantics<parallel>], iteration_bounds = array<i64: 1>, scalar_prefetch = 0 : i64, scratch_operands = 0 : i64, tpu.core_type = #tpu.core_type<tc>, window_params = [{transform_indices = @transform_0, window_bounds = array<i64: 8, 36>}, {pipeline_mode = #tpu.pipeline_mode<synchronous>, transform_indices = @transform_1, window_bounds = array<i64: 36, 64>}, {pipeline_mode = #tpu.pipeline_mode<synchronous>, transform_indices = @transform_2, window_bounds = array<i64: 1, 64>}, {pipeline_mode = #tpu.pipeline_mode<synchronous>, transform_indices = @transform_3, window_bounds = array<i64: 64, 64>}, {pipeline_mode = #tpu.pipeline_mode<synchronous>, transform_indices = @transform_4, window_bounds = array<i64: 1, 64>}, {pipeline_mode = #tpu.pipeline_mode<synchronous>, transform_indices = @transform_5, window_bounds = array<i64: 64, 30>}, {pipeline_mode = #tpu.pipeline_mode<synchronous>, transform_indices = @transform_6, window_bounds = array<i64: 1, 30>}, {transform_indices = @transform_7, window_bounds = array<i64: 8, 30>}]} {
    %c0 = arith.constant 0 : index
    %c0_0 = arith.constant 0 : index
    %0 = vector.load %arg1[%c0, %c0_0] : memref<8x36xf32, #tpu.memory_space<vmem>>, vector<8x36xf32>
    %c0_1 = arith.constant 0 : index
    %c0_2 = arith.constant 0 : index
    %1 = vector.load %arg2[%c0_1, %c0_2] : memref<36x64xf32, #tpu.memory_space<vmem>>, vector<36x64xf32>
    %cst = arith.constant dense<0.000000e+00> : vector<8x64xf32>
    %2 = tpu.matmul %0, %1, %cst {dimension_numbers = #tpu.dot_dimension_numbers<[1], [0], [0], [1], [0, 0, 1, 1], [], []>} : vector<8x36xf32>, vector<36x64xf32>, vector<8x64xf32> -> vector<8x64xf32>
    %c0_3 = arith.constant 0 : index
    %c0_4 = arith.constant 0 : index
    %3 = vector.load %arg3[%c0_3, %c0_4] : memref<1x64xf32, #tpu.memory_space<vmem>>, vector<1x64xf32>
    %4 = vector.broadcast %3 : vector<1x64xf32> to vector<8x64xf32>
    %5 = arith.addf %2, %4 : vector<8x64xf32>
    %cst_5 = arith.constant 0.000000e+00 : f32
    %6 = vector.broadcast %cst_5 : f32 to vector<8x64xf32>
    %7 = arith.maximumf %5, %6 : vector<8x64xf32>
    %c0_6 = arith.constant 0 : index
    %c0_7 = arith.constant 0 : index
    %8 = vector.load %arg4[%c0_6, %c0_7] : memref<64x64xf32, #tpu.memory_space<vmem>>, vector<64x64xf32>
    %cst_8 = arith.constant dense<0.000000e+00> : vector<8x64xf32>
    %9 = tpu.matmul %7, %8, %cst_8 {dimension_numbers = #tpu.dot_dimension_numbers<[1], [0], [0], [1], [0, 0, 1, 1], [], []>} : vector<8x64xf32>, vector<64x64xf32>, vector<8x64xf32> -> vector<8x64xf32>
    %c0_9 = arith.constant 0 : index
    %c0_10 = arith.constant 0 : index
    %10 = vector.load %arg5[%c0_9, %c0_10] : memref<1x64xf32, #tpu.memory_space<vmem>>, vector<1x64xf32>
    %11 = vector.broadcast %10 : vector<1x64xf32> to vector<8x64xf32>
    %12 = arith.addf %9, %11 : vector<8x64xf32>
    %cst_11 = arith.constant 0.000000e+00 : f32
    %13 = vector.broadcast %cst_11 : f32 to vector<8x64xf32>
    %14 = arith.maximumf %12, %13 : vector<8x64xf32>
    %c0_12 = arith.constant 0 : index
    %c0_13 = arith.constant 0 : index
    %15 = vector.load %arg6[%c0_12, %c0_13] : memref<64x30xf32, #tpu.memory_space<vmem>>, vector<64x30xf32>
    %cst_14 = arith.constant dense<0.000000e+00> : vector<8x30xf32>
    %16 = tpu.matmul %14, %15, %cst_14 {dimension_numbers = #tpu.dot_dimension_numbers<[1], [0], [0], [1], [0, 0, 1, 1], [], []>} : vector<8x64xf32>, vector<64x30xf32>, vector<8x30xf32> -> vector<8x30xf32>
    %c0_15 = arith.constant 0 : index
    %c0_16 = arith.constant 0 : index
    %17 = vector.load %arg7[%c0_15, %c0_16] : memref<1x30xf32, #tpu.memory_space<vmem>>, vector<1x30xf32>
    %18 = vector.broadcast %17 : vector<1x30xf32> to vector<8x30xf32>
    %19 = arith.addf %16, %18 : vector<8x30xf32>
    %c0_17 = arith.constant 0 : index
    %c0_18 = arith.constant 0 : index
    %20 = vector.load %arg8[%c0_17, %c0_18] : memref<8x30xf32, #tpu.memory_space<vmem>>, vector<8x30xf32>
    tpu.vector_store %arg8[%c0_17, %c0_18], %19 {strides = array<i32>} : memref<8x30xf32, #tpu.memory_space<vmem>>, vector<8x30xf32>,
    return
  }
  func.func @transform_0(%arg0: i32) -> (i32, i32) {
    %c0_i32 = arith.constant 0 : i32
    %c0_i32_0 = arith.constant 0 : i32
    return %arg0, %c0_i32 : i32, i32
  }
  func.func @transform_1(%arg0: i32) -> (i32, i32) {
    %c0_i32 = arith.constant 0 : i32
    %c0_i32_0 = arith.constant 0 : i32
    %c0_i32_1 = arith.constant 0 : i32
    return %c0_i32, %c0_i32_0 : i32, i32
  }
  func.func @transform_2(%arg0: i32) -> (i32, i32) {
    %c0_i32 = arith.constant 0 : i32
    %c0_i32_0 = arith.constant 0 : i32
    %c0_i32_1 = arith.constant 0 : i32
    return %c0_i32, %c0_i32_0 : i32, i32
  }
  func.func @transform_3(%arg0: i32) -> (i32, i32) {
    %c0_i32 = arith.constant 0 : i32
    %c0_i32_0 = arith.constant 0 : i32
    %c0_i32_1 = arith.constant 0 : i32
    return %c0_i32, %c0_i32_0 : i32, i32
  }
  func.func @transform_4(%arg0: i32) -> (i32, i32) {
    %c0_i32 = arith.constant 0 : i32
    %c0_i32_0 = arith.constant 0 : i32
    %c0_i32_1 = arith.constant 0 : i32
    return %c0_i32, %c0_i32_0 : i32, i32
  }
  func.func @transform_5(%arg0: i32) -> (i32, i32) {
    %c0_i32 = arith.constant 0 : i32
    %c0_i32_0 = arith.constant 0 : i32
    %c0_i32_1 = arith.constant 0 : i32
    return %c0_i32, %c0_i32_0 : i32, i32
  }
  func.func @transform_6(%arg0: i32) -> (i32, i32) {
    %c0_i32 = arith.constant 0 : i32
    %c0_i32_0 = arith.constant 0 : i32
    %c0_i32_1 = arith.constant 0 : i32
    return %c0_i32, %c0_i32_0 : i32, i32
  }
  func.func @transform_7(%arg0: i32) -> (i32, i32) {
    %c0_i32 = arith.constant 0 : i32
    %c0_i32_0 = arith.constant 0 : i32
    return %arg0, %c0_i32 : i32, i32
  }
}

</mosaic_0001>

<llo_original>
// kernel: tpu_custom_call.1
$region0: #{tpu_custom_call.1}
  #allocation0 [shape = 'u32[]', space=smem, size = 0x4, offset = 0x4, fixed_abs, tag = 'smem constant byte address 0x4 - core index']
  #allocation1 [shape = 'u32[144,128]{1,0:T(1,128)}', space=vmem, size = 0x12000, scoped, tag = 'internal scratch']
  %s0 = inlined_call_operand.vmem [shape: f32[8,36], index: 0, kind: input, shape index: {}]
  %s1 = inlined_call_operand.hbm [shape: f32[36,64], index: 1, kind: input, shape index: {}]
  %s2 = inlined_call_operand.vmem [shape: f32[1,64], index: 2, kind: input, shape index: {}]
  %s3 = inlined_call_operand.vmem [shape: f32[64,64], index: 3, kind: input, shape index: {}]
  %s4 = inlined_call_operand.vmem [shape: f32[1,64], index: 4, kind: input, shape index: {}]
  %s5 = inlined_call_operand.vmem [shape: f32[64,30], index: 5, kind: input, shape index: {}]
  %s6 = inlined_call_operand.vmem [shape: f32[1,30], index: 6, kind: input, shape index: {}]
  %s7 = inlined_call_operand.hbm [shape: f32[8,30], index: 7, kind: output, shape index: {}]
  %s8 = sld [smem:[#allocation0]]
  $region42: #{tpu_custom_call.1} parent=0
    _
  %s10 = ssub.s32 1, %s8
  %s11 = scalar_select 0, %s10, %s8
  $region1: #{tpu_custom_call.1} parent=0
    #allocation2 [shape = 'u8[20480]{0}', space=vmem, size = 0x5000, scoped, tag = 'input window, operand 1, single buffered']
    #allocation3 [shape = 's32[1]{0}', space=sflag, size = 0x4, scoped, tag = 'scoped memory for tpu_custom_call.1']
    #allocation4 [shape = 's32[1]{0}', space=sflag, size = 0x4, scoped, tag = 'scoped memory for tpu_custom_call.1']
    #allocation5 [shape = 'u8[4096]{0}', space=vmem, size = 0x1000, scoped, tag = 'output window, operand 0, single buffered']
    %12 = vsyncpa [#allocation3], 0
    %13 = vsyncpa [#allocation4], 0
    // Predicated region
    $region2: #{tpu_custom_call.1} parent=1 // pred_check
      _
    $region3: #{tpu_custom_call.1} parent=1 // pred_check_branch
      %15 = sbr.rel (0) target = $region5
    $region4: #{tpu_custom_call.1} parent=1 // pred_region
      _
    $region5: #{tpu_custom_call.1} parent=1 // pred_fallthru
      _
    // Predicated region
    $region6: #{tpu_custom_call.1} parent=1 // pred_check
      _
    $region7: #{tpu_custom_call.1} parent=1 // pred_check_branch
      %17 = sbr.rel (0) target = $region9
    $region8: #{tpu_custom_call.1} parent=1 // pred_region
      %s19 = ssub.s32 640, 640
      %20 = vsyncadd [#allocation3], %s19
      %s21 = sshll.u32 [#allocation2], 4
      %s22 = int_to_ptr.vmem [resolvable:$true] %s21
      %27 = dma.hbm_to_vmem [thread:$0]  %s1, 640, %s22, [#allocation3], 128, 128, 8
    $region9: #{tpu_custom_call.1} parent=1 // pred_fallthru
      _
    // Predicated region
    $region10: #{tpu_custom_call.1} parent=1 // pred_check
      _
    $region11: #{tpu_custom_call.1} parent=1 // pred_check_branch
      %29 = sbr.rel (0) target = $region13
    $region12: #{tpu_custom_call.1} parent=1 // pred_region
      _
    $region13: #{tpu_custom_call.1} parent=1 // pred_fallthru
      _
    // Predicated region
    $region14: #{tpu_custom_call.1} parent=1 // pred_check
      _
    $region15: #{tpu_custom_call.1} parent=1 // pred_check_branch
      %31 = sbr.rel (0) target = $region17
    $region16: #{tpu_custom_call.1} parent=1 // pred_region
      _
    $region17: #{tpu_custom_call.1} parent=1 // pred_fallthru
      _
    // Predicated region
    $region18: #{tpu_custom_call.1} parent=1 // pred_check
      _
    $region19: #{tpu_custom_call.1} parent=1 // pred_check_branch
      %33 = sbr.rel (0) target = $region21
    $region20: #{tpu_custom_call.1} parent=1 // pred_region
      _
    $region21: #{tpu_custom_call.1} parent=1 // pred_fallthru
      _
    // Predicated region
    $region22: #{tpu_custom_call.1} parent=1 // pred_check
      _
    $region23: #{tpu_custom_call.1} parent=1 // pred_check_branch
      %35 = sbr.rel (0) target = $region25
    $region24: #{tpu_custom_call.1} parent=1 // pred_region
      _
    $region25: #{tpu_custom_call.1} parent=1 // pred_fallthru
      _
    // Predicated region
    $region26: #{tpu_custom_call.1} parent=1 // pred_check
      _
    $region27: #{tpu_custom_call.1} parent=1 // pred_check_branch
      %37 = sbr.rel (0) target = $region29
    $region28: #{tpu_custom_call.1} parent=1 // pred_region
      _
    $region29: #{tpu_custom_call.1} parent=1 // pred_fallthru
      _
    // Predicated region
    $region30: #{tpu_custom_call.1} parent=1 // pred_check
      _
    $region31: #{tpu_custom_call.1} parent=1 // pred_check_branch
      %39 = sbr.rel (0) target = $region33
    $region32: #{tpu_custom_call.1} parent=1 // pred_region
      %40 = dma.done [#allocation3], 640
    $region33: #{tpu_custom_call.1} parent=1 // pred_fallthru
      _
    %v41 = vld [vmem:[%s0] sm:$0xff]
    %v42 = vld [vmem:[#allocation2] sm:$0xff]
    %v43 = vld [vmem:[#allocation2 + $0x8] sm:$0xff]
    %v44 = vld [vmem:[#allocation2 + $0x10] sm:$0xff]
    %v45 = vld [vmem:[#allocation2 + $0x18] sm:$0xff]
    %v46 = vld [vmem:[#allocation2 + $0x20] sm:$0xf]
    %v47 = vld [vmem:[%s2] sm:$0x1]
    %v49 = vlaneseq
    %v50 = vshrl.u32 %v49, 7
    %v51 = vsub.s32 0, %v50
    %v52 = vrot.slane %v47, %v51
    %vm54 = vcmask 293888
    %v56 = vsel %vm54, %v41, 0
    %vm58 = vcmask 1043456
    %v60 = vsel %vm58, %v46, 0
    %62 = vmatprep.subr.mxu0 0.0
    %63 = vmatpush1.msra.mxu0 0.0
    %64 = vmatprep.subr.mxu0 0.0
    %65 = vmatpush1.msra.mxu0 0.0
    %66 = vmatprep.subr.mxu0 0.0
    %67 = vmatpush1.msra.mxu0 0.0
    %68 = vmatprep.subr.mxu0 0.0
    %69 = vmatpush1.msra.mxu0 0.0
    %70 = vmatprep.subr.mxu0 0.0
    %71 = vmatpush1.msra.mxu0 0.0
    %72 = vmatprep.subr.mxu0 0.0
    %73 = vmatpush1.msra.mxu0 0.0
    %74 = vmatprep.subr.mxu0 0.0
    %75 = vmatpush1.msra.mxu0 0.0
    %76 = vmatprep.subr.mxu0 0.0
    %77 = vmatpush1.msra.mxu0 0.0
    %78 = vmatprep.subr.mxu0 0.0
    %79 = vmatpush1.msra.mxu0 0.0
    %80 = vmatprep.subr.mxu0 0.0
    %81 = vmatpush1.msra.mxu0 0.0
    %82 = vmatprep.subr.mxu0 0.0
    %83 = vmatpush1.msra.mxu0 0.0
    %84 = vmatprep.subr.mxu0 0.0
    %85 = vmatpush1.msra.mxu0 %v60
    %86 = vmatprep.subr.mxu0 0.0
    %87 = vmatpush1.msra.mxu0 %v45
    %88 = vmatprep.subr.mxu0 0.0
    %89 = vmatpush1.msra.mxu0 %v44
    %90 = vmatprep.subr.mxu0 0.0
    %91 = vmatpush1.msra.mxu0 %v43
    %92 = vmatprep.subr.mxu0 0.0
    %93 = vmatpush1.msra.mxu0 %v42
    %94 = vmatprep.subr.mxu0 0.0
    %95 = vmatpush2.msra.mxu0 0.0
    %96 = vmatprep.subr.mxu0 0.0
    %97 = vmatpush2.msra.mxu0 0.0
    %98 = vmatprep.subr.mxu0 0.0
    %99 = vmatpush2.msra.mxu0 0.0
    %100 = vmatprep.subr.mxu0 0.0
    %101 = vmatpush2.msra.mxu0 0.0
    %102 = vmatprep.subr.mxu0 0.0
    %103 = vmatpush2.msra.mxu0 0.0
    %104 = vmatprep.subr.mxu0 0.0
    %105 = vmatpush2.msra.mxu0 0.0
    %106 = vmatprep.subr.mxu0 0.0
    %107 = vmatpush2.msra.mxu0 0.0
    %108 = vmatprep.subr.mxu0 0.0
    %109 = vmatpush2.msra.mxu0 0.0
    %110 = vmatprep.subr.mxu0 0.0
    %111 = vmatpush2.msra.mxu0 0.0
    %112 = vmatprep.subr.mxu0 0.0
    %113 = vmatpush2.msra.mxu0 0.0
    %114 = vmatprep.subr.mxu0 0.0
    %115 = vmatpush2.msra.mxu0 0.0
    %116 = vmatprep.subr.mxu0 0.0
    %117 = vmatpush2.msra.mxu0 0.0
    %118 = vmatprep.subr.mxu0 0.0
    %119 = vmatpush2.msra.mxu0 0.0
    %120 = vmatprep.subr.mxu0 0.0
    %121 = vmatpush2.msra.mxu0 0.0
    %122 = vmatprep.subr.mxu0 0.0
    %123 = vmatpush2.msra.mxu0 0.0
    %124 = vmatprep.subr.mxu0 0.0
    %125 = vmatpush2.msra.mxu0 0.0
    %126 = vmatprep.mubr.f32.mxu0 0.0
    %127 = vmatmul.mubr.f32.gmra.mxu0 %v56
    %v128 = vpop.f32.mrf.mxu0
    %v129 = vadd.f32 %v52, %v128
    %v130 = vpop.f32.mrf.mxu0
    %131 = vdwg.mxu0
    %v132 = vmax.f32 %v129, 0.0
    %v133 = vld [vmem:[%s3] sm:$0xff]
    %v134 = vld [vmem:[%s3 + $0x8] sm:$0xff]
    %v135 = vld [vmem:[%s3 + $0x10] sm:$0xff]
    %v136 = vld [vmem:[%s3 + $0x18] sm:$0xff]
    %v137 = vld [vmem:[%s3 + $0x20] sm:$0xff]
    %v138 = vld [vmem:[%s3 + $0x28] sm:$0xff]
    %v139 = vld [vmem:[%s3 + $0x30] sm:$0xff]
    %v140 = vld [vmem:[%s3 + $0x38] sm:$0xff]
    %v141 = vld [vmem:[%s4] sm:$0x1]
    %v143 = vlaneseq
    %v144 = vshrl.u32 %v143, 7
    %v145 = vsub.s32 0, %v144
    %v146 = vrot.slane %v141, %v145
    %vm148 = vcmask 523264
    %v150 = vsel %vm148, %v132, 0
    %152 = vmatprep.subr.mxu0 0.0
    %153 = vmatpush1.msra.mxu0 0.0
    %154 = vmatprep.subr.mxu0 0.0
    %155 = vmatpush1.msra.mxu0 0.0
    %156 = vmatprep.subr.mxu0 0.0
    %157 = vmatpush1.msra.mxu0 0.0
    %158 = vmatprep.subr.mxu0 0.0
    %159 = vmatpush1.msra.mxu0 0.0
    %160 = vmatprep.subr.mxu0 0.0
    %161 = vmatpush1.msra.mxu0 0.0
    %162 = vmatprep.subr.mxu0 0.0
    %163 = vmatpush1.msra.mxu0 0.0
    %164 = vmatprep.subr.mxu0 0.0
    %165 = vmatpush1.msra.mxu0 0.0
    %166 = vmatprep.subr.mxu0 0.0
    %167 = vmatpush1.msra.mxu0 0.0
    %168 = vmatprep.subr.mxu0 0.0
    %169 = vmatpush1.msra.mxu0 %v140
    %170 = vmatprep.subr.mxu0 0.0
    %171 = vmatpush1.msra.mxu0 %v139
    %172 = vmatprep.subr.mxu0 0.0
    %173 = vmatpush1.msra.mxu0 %v138
    %174 = vmatprep.subr.mxu0 0.0
    %175 = vmatpush1.msra.mxu0 %v137
    %176 = vmatprep.subr.mxu0 0.0
    %177 = vmatpush1.msra.mxu0 %v136
    %178 = vmatprep.subr.mxu0 0.0
    %179 = vmatpush1.msra.mxu0 %v135
    %180 = vmatprep.subr.mxu0 0.0
    %181 = vmatpush1.msra.mxu0 %v134
    %182 = vmatprep.subr.mxu0 0.0
    %183 = vmatpush1.msra.mxu0 %v133
    %184 = vmatprep.subr.mxu0 0.0
    %185 = vmatpush2.msra.mxu0 0.0
    %186 = vmatprep.subr.mxu0 0.0
    %187 = vmatpush2.msra.mxu0 0.0
    %188 = vmatprep.subr.mxu0 0.0
    %189 = vmatpush2.msra.mxu0 0.0
    %190 = vmatprep.subr.mxu0 0.0
    %191 = vmatpush2.msra.mxu0 0.0
    %192 = vmatprep.subr.mxu0 0.0
    %193 = vmatpush2.msra.mxu0 0.0
    %194 = vmatprep.subr.mxu0 0.0
    %195 = vmatpush2.msra.mxu0 0.0
    %196 = vmatprep.subr.mxu0 0.0
    %197 = vmatpush2.msra.mxu0 0.0
    %198 = vmatprep.subr.mxu0 0.0
    %199 = vmatpush2.msra.mxu0 0.0
    %200 = vmatprep.subr.mxu0 0.0
    %201 = vmatpush2.msra.mxu0 0.0
    %202 = vmatprep.subr.mxu0 0.0
    %203 = vmatpush2.msra.mxu0 0.0
    %204 = vmatprep.subr.mxu0 0.0
    %205 = vmatpush2.msra.mxu0 0.0
    %206 = vmatprep.subr.mxu0 0.0
    %207 = vmatpush2.msra.mxu0 0.0
    %208 = vmatprep.subr.mxu0 0.0
    %209 = vmatpush2.msra.mxu0 0.0
    %210 = vmatprep.subr.mxu0 0.0
    %211 = vmatpush2.msra.mxu0 0.0
    %212 = vmatprep.subr.mxu0 0.0
    %213 = vmatpush2.msra.mxu0 0.0
    %214 = vmatprep.subr.mxu0 0.0
    %215 = vmatpush2.msra.mxu0 0.0
    %216 = vmatprep.mubr.f32.mxu0 0.0
    %217 = vmatmul.mubr.f32.gmra.mxu0 %v150
    %v218 = vpop.f32.mrf.mxu0
    %v219 = vadd.f32 %v146, %v218
    %v220 = vpop.f32.mrf.mxu0
    %221 = vdwg.mxu0
    %v222 = vmax.f32 %v219, 0.0
    %v223 = vld [vmem:[%s5] sm:$0xff]
    %v224 = vld [vmem:[%s5 + $0x8] sm:$0xff]
    %v225 = vld [vmem:[%s5 + $0x10] sm:$0xff]
    %v226 = vld [vmem:[%s5 + $0x18] sm:$0xff]
    %v227 = vld [vmem:[%s5 + $0x20] sm:$0xff]
    %v228 = vld [vmem:[%s5 + $0x28] sm:$0xff]
    %v229 = vld [vmem:[%s5 + $0x30] sm:$0xff]
    %v230 = vld [vmem:[%s5 + $0x38] sm:$0xff]
    %v231 = vld [vmem:[%s6] sm:$0x1]
    %v233 = vlaneseq
    %v234 = vshrl.u32 %v233, 7
    %v235 = vsub.s32 0, %v234
    %v236 = vrot.slane %v231, %v235
    %v239 = vsel %vm148, %v222, 0
    %241 = vmatprep.subr.mxu0 0.0
    %242 = vmatpush1.msra.mxu0 0.0
    %243 = vmatprep.subr.mxu0 0.0
    %244 = vmatpush1.msra.mxu0 0.0
    %245 = vmatprep.subr.mxu0 0.0
    %246 = vmatpush1.msra.mxu0 0.0
    %247 = vmatprep.subr.mxu0 0.0
    %248 = vmatpush1.msra.mxu0 0.0
    %249 = vmatprep.subr.mxu0 0.0
    %250 = vmatpush1.msra.mxu0 0.0
    %251 = vmatprep.subr.mxu0 0.0
    %252 = vmatpush1.msra.mxu0 0.0
    %253 = vmatprep.subr.mxu0 0.0
    %254 = vmatpush1.msra.mxu0 0.0
    %255 = vmatprep.subr.mxu0 0.0
    %256 = vmatpush1.msra.mxu0 0.0
    %257 = vmatprep.subr.mxu0 0.0
    %258 = vmatpush1.msra.mxu0 %v230
    %259 = vmatprep.subr.mxu0 0.0
    %260 = vmatpush1.msra.mxu0 %v229
    %261 = vmatprep.subr.mxu0 0.0
    %262 = vmatpush1.msra.mxu0 %v228
    %263 = vmatprep.subr.mxu0 0.0
    %264 = vmatpush1.msra.mxu0 %v227
    %265 = vmatprep.subr.mxu0 0.0
    %266 = vmatpush1.msra.mxu0 %v226
    %267 = vmatprep.subr.mxu0 0.0
    %268 = vmatpush1.msra.mxu0 %v225
    %269 = vmatprep.subr.mxu0 0.0
    %270 = vmatpush1.msra.mxu0 %v224
    %271 = vmatprep.subr.mxu0 0.0
    %272 = vmatpush1.msra.mxu0 %v223
    %273 = vmatprep.subr.mxu0 0.0
    %274 = vmatpush2.msra.mxu0 0.0
    %275 = vmatprep.subr.mxu0 0.0
    %276 = vmatpush2.msra.mxu0 0.0
    %277 = vmatprep.subr.mxu0 0.0
    %278 = vmatpush2.msra.mxu0 0.0
    %279 = vmatprep.subr.mxu0 0.0
    %280 = vmatpush2.msra.mxu0 0.0
    %281 = vmatprep.subr.mxu0 0.0
    %282 = vmatpush2.msra.mxu0 0.0
    %283 = vmatprep.subr.mxu0 0.0
    %284 = vmatpush2.msra.mxu0 0.0
    %285 = vmatprep.subr.mxu0 0.0
    %286 = vmatpush2.msra.mxu0 0.0
    %287 = vmatprep.subr.mxu0 0.0
    %288 = vmatpush2.msra.mxu0 0.0
    %289 = vmatprep.subr.mxu0 0.0
    %290 = vmatpush2.msra.mxu0 0.0
    %291 = vmatprep.subr.mxu0 0.0
    %292 = vmatpush2.msra.mxu0 0.0
    %293 = vmatprep.subr.mxu0 0.0
    %294 = vmatpush2.msra.mxu0 0.0
    %295 = vmatprep.subr.mxu0 0.0
    %296 = vmatpush2.msra.mxu0 0.0
    %297 = vmatprep.subr.mxu0 0.0
    %298 = vmatpush2.msra.mxu0 0.0
    %299 = vmatprep.subr.mxu0 0.0
    %300 = vmatpush2.msra.mxu0 0.0
    %301 = vmatprep.subr.mxu0 0.0
    %302 = vmatpush2.msra.mxu0 0.0
    %303 = vmatprep.subr.mxu0 0.0
    %304 = vmatpush2.msra.mxu0 0.0
    %305 = vmatprep.mubr.f32.mxu0 0.0
    %306 = vmatmul.mubr.f32.gmra.mxu0 %v239
    %v307 = vpop.f32.mrf.mxu0
    %v308 = vadd.f32 %v236, %v307
    %v309 = vpop.f32.mrf.mxu0
    %310 = vdwg.mxu0
    %vm311 = vcmask 244736
    %312 = vst.msk [vmem:[#allocation5] sm:$0xff] %vm311, %v308
    // Predicated region
    $region34: #{tpu_custom_call.1} parent=1 // pred_check
      _
    $region35: #{tpu_custom_call.1} parent=1 // pred_check_branch
      %314 = sbr.rel (0) target = $region37
    $region36: #{tpu_custom_call.1} parent=1 // pred_region
      %s316 = ssub.s32 128, 128
      %317 = vsyncadd [#allocation4], %s316
      %s319 = sshll.u32 [#allocation5], 4
      %s320 = int_to_ptr.vmem [resolvable:$true] %s319
      %322 = dma.vmem_to_hbm [thread:$0]  %s320, 128, %s7, [#allocation4]
    $region37: #{tpu_custom_call.1} parent=1 // pred_fallthru
      _
    // Predicated region
    $region38: #{tpu_custom_call.1} parent=1 // pred_check
      _
    $region39: #{tpu_custom_call.1} parent=1 // pred_check_branch
      %324 = sbr.rel (0) target = $region41
    $region40: #{tpu_custom_call.1} parent=1 // pred_region
      %325 = dma.done [#allocation4], 128
    $region41: #{tpu_custom_call.1} parent=1 // pred_fallthru
      _
    %326 = vsyncpa [#allocation3], 1
    %327 = vsyncpa [#allocation4], 1

</llo_original>
